<compile_context>
chip_gen: v6e
topology: v6e:2x2x1
jax: 0.10.0
libtpu: 0.0.40
codegen_flags: <defaults>
</compile_context>

<pallas_src>
import functools

import jax
import jax.numpy as jnp
import numpy as np
from jax import lax
from jax.experimental import pallas as pl
from jax.experimental.pallas import tpu as pltpu

EPS = 1e-5
LANE = 128
SUB = 8


def _round_up(x, m):
    return (x + m - 1) // m * m


def _linear_interp_indices(L_in, L_out):
    """low/high gather indices + frac weights for F.interpolate(mode='linear', align_corners=True)."""
    if L_out == 1:
        src = np.zeros((1,), np.float64)
    else:
        src = np.arange(L_out, dtype=np.float64) * (L_in - 1) / (L_out - 1)
    low = np.clip(np.floor(src).astype(np.int32), 0, L_in - 1)
    high = np.clip(low + 1, 0, L_in - 1)
    frac = (src - low).astype(np.float32)
    return low, high, frac


def _tpu_generation_budgets():
    """(vmem_limit cap, target double-buffered block bytes) per chip generation."""
    try:
        kind = jax.devices()[0].device_kind.lower()
    except Exception:  # pragma: no cover - defensive
        kind = ""
    if "v5" in kind or "v6" in kind:
        # 128 MiB physical VMEM, single TensorCore: spend VMEM on big blocks.
        return 100 << 20, 16 << 20
    # v7x (64 MiB physical, 2 TCs) and unknown generations: stay conservative.
    return 48 << 20, 8 << 20


def _shifted_tap(x, shift, L_out, lane):
    """Conv tap x[t - shift] with zero 'same' padding outside [0, L_out).

    The shift is done with pltpu.roll (XLU slot, essentially free next to the VPU work)
    and the wrap-around / out-of-range lanes are masked to zero.
    """
    Lw = x.shape[-1]
    s = shift % Lw
    rolled = x if s == 0 else pltpu.roll(x, shift=s, axis=1)
    valid = (lane >= shift) & (lane < L_out + shift)
    return jnp.where(valid, rolled, 0.0)


# ----------------------------------------------------------------------------
# Stage 1: linear upsample (single lerp) + conv1 (K rolled-tap matmuls) + BN1 partials
# ----------------------------------------------------------------------------
def _upsample_conv1_kernel(xlo_ref, xhi_ref, wf_ref, w1_ref,
                           y1_ref, res_ref, mean_ref, m2_ref,
                           *, K, pad_l, L_out, Bt):
    C_out_p = y1_ref.shape[1]
    Lw = y1_ref.shape[2]
    lane = lax.broadcasted_iota(jnp.int32, (1, Lw), 1)
    wf = wf_ref[0]                                     # (1, Lw), broadcasts over channels
    inv_n = 1.0 / L_out

    for b in range(Bt):                                # Bt is small -> unrolled
        xl = xlo_ref[b]                                # (C_in_p, Lw) f32
        xh = xhi_ref[b]
        x_up = xl + (xh - xl) * wf                     # lerp computed ONCE (VPU)

        # residual slice written immediately (bf16); x_up never round-trips HBM.
        res_ref[b] = x_up[:C_out_p, :].astype(res_ref.dtype)

        # conv1: K accumulated small bf16 MXU matmuls (f32 accumulation).
        acc = jnp.zeros((C_out_p, Lw), jnp.float32)
        for j in range(K):
            tap = _shifted_tap(x_up, pad_l - j, L_out, lane).astype(jnp.bfloat16)
            acc = acc + jnp.dot(w1_ref[j], tap, preferred_element_type=jnp.float32)
        y1 = jnp.where(lane < L_out, acc, 0.0)
        y1_ref[b] = y1.astype(y1_ref.dtype)            # bf16 inter-stage store

        # per-batch-element BN partials (mean, centered M2), combined in the wrapper.
        mean_b = jnp.sum(y1, axis=-1, keepdims=True) * inv_n
        d = jnp.where(lane < L_out, y1 - mean_b, 0.0)
        mean_ref[b] = mean_b
        m2_ref[b] = jnp.sum(d * d, axis=-1, keepdims=True)


# ----------------------------------------------------------------------------
# Stage 2: bn1 (folded scale/shift) + relu + conv2 (K rolled-tap matmuls) + BN2 partials
# ----------------------------------------------------------------------------
def _bn_relu_conv2_kernel(y1_ref, sc_ref, sh_ref, w2_ref,
                          y2_ref, mean_ref, m2_ref,
                          *, K, pad_l, L_out, Bt):
    C_out_p = y2_ref.shape[1]
    Lw = y2_ref.shape[2]
    lane = lax.broadcasted_iota(jnp.int32, (1, Lw), 1)
    sc = sc_ref[...]
    sh = sh_ref[...]
    inv_n = 1.0 / L_out

    for b in range(Bt):
        h = jnp.maximum(y1_ref[b].astype(jnp.float32) * sc + sh, 0.0)   # bn1 + relu
        acc = jnp.zeros((C_out_p, Lw), jnp.float32)
        for j in range(K):
            tap = _shifted_tap(h, pad_l - j, L_out, lane).astype(jnp.bfloat16)
            acc = acc + jnp.dot(w2_ref[j], tap, preferred_element_type=jnp.float32)
        y2 = jnp.where(lane < L_out, acc, 0.0)
        y2_ref[b] = y2.astype(y2_ref.dtype)            # bf16 inter-stage store

        mean_b = jnp.sum(y2, axis=-1, keepdims=True) * inv_n
        d = jnp.where(lane < L_out, y2 - mean_b, 0.0)
        mean_ref[b] = mean_b
        m2_ref[b] = jnp.sum(d * d, axis=-1, keepdims=True)


# ----------------------------------------------------------------------------
# Stage 3: bn2 (folded) + relu + residual add
# ----------------------------------------------------------------------------
def _bn_relu_residual_kernel(y2_ref, sc_ref, sh_ref, res_ref, o_ref, *, Bt):
    sc = sc_ref[...]
    sh = sh_ref[...]
    for b in range(Bt):
        h = jnp.maximum(y2_ref[b].astype(jnp.float32) * sc + sh, 0.0)
        o_ref[b] = (h + res_ref[b].astype(jnp.float32)).astype(o_ref.dtype)


def _combine_bn_stats(mean_b, m2_b, gamma_p, beta_p, n_per_item, n_items):
    """Stable parallel-variance combination of per-batch-element (mean, M2)."""
    mu = mean_b[:, :, 0]                                   # (B, C_p)
    m2 = m2_b[:, :, 0]
    mean = jnp.mean(mu, axis=0)                            # (C_p,)
    m2_tot = jnp.sum(m2, axis=0) + n_per_item * jnp.sum((mu - mean) ** 2, axis=0)
    var = m2_tot / (n_per_item * n_items)                  # biased (training-mode norm)
    inv = lax.rsqrt(var + EPS)
    scale = gamma_p * inv
    shift = beta_p - mean * scale
    return (scale.reshape(-1, 1).astype(jnp.float32),
            shift.reshape(-1, 1).astype(jnp.float32))


def res_upsample_block(x, w1, w2, g1, b1, g2, b2, upsample_rate):
    """x: (B, C_in, L); w1: (C_out, C_in, K); w2: (C_out, C_out, K); g*/b*: (C_out,)."""
    x = x.astype(jnp.float32)
    B, C_in, L_in = x.shape
    C_out, _, K = w1.shape
    assert C_out <= C_in, "module requires n_output <= n_input (residual slice)"
    pad_l = (K - 1) // 2
    L_out = int(L_in * upsample_rate)
    Lw = _round_up(max(L_out, LANE), LANE)                 # lane-dense working width
    C_in_p = _round_up(C_in, SUB)
    C_out_p = _round_up(C_out, SUB)
    f32, bf16 = jnp.float32, jnp.bfloat16

    # ---- generation-aware VMEM budget & batch blocking --------------------------------
    vmem_cap, target_block = _tpu_generation_budgets()
    per_elem_bytes = 2 * C_in_p * Lw * 4 + 2 * C_out_p * Lw * 2   # stage-1 (largest)
    Bt = 1
    for d in range(1, B + 1):
        if B % d == 0 and 2 * d * per_elem_bytes <= target_block:
            Bt = d
    grid = (B // Bt,)

    def vmem_limit(block_bytes):
        return int(min(vmem_cap, max(2 * block_bytes + (2 << 20), 4 << 20)))

    # ---- upsample plumbing: gather the two source columns + frac weights (wrapper);
    #      the lerp itself runs once per element inside stage 1.  No halo frame.
    low, high, frac = _linear_interp_indices(L_in, L_out)
    xlo = jnp.take(x, jnp.asarray(low), axis=2)            # (B, C_in, L_out)
    xhi = jnp.take(x, jnp.asarray(high), axis=2)
    pad3 = ((0, 0), (0, C_in_p - C_in), (0, Lw - L_out))
    xlo_p = jnp.pad(xlo, pad3)
    xhi_p = jnp.pad(xhi, pad3)
    wf_p = jnp.pad(jnp.asarray(frac, f32).reshape(1, 1, L_out),
                   ((0, 0), (0, 0), (0, Lw - L_out)))

    # ---- per-tap bf16 conv weights: (K, C_out_p, C_in_p), zero padded
    def fold_weights(w, cin, cin_p):
        co = w.shape[0]
        wt = jnp.transpose(w, (2, 0, 1)).astype(f32)       # (K, C_out, C_in)
        wt = jnp.pad(wt, ((0, 0), (0, C_out_p - co), (0, cin_p - cin)))
        return wt.astype(bf16)

    w1f = fold_weights(w1, C_in, C_in_p)
    w2f = fold_weights(w2, C_out, C_out_p)
    g1p = jnp.pad(g1.astype(f32), (0, C_out_p - C_out))
    b1p = jnp.pad(b1.astype(f32), (0, C_out_p - C_out))
    g2p = jnp.pad(g2.astype(f32), (0, C_out_p - C_out))
    b2p = jnp.pad(b2.astype(f32), (0, C_out_p - C_out))

    # ------------------ stage 1: upsample + conv1 + BN1 partials ------------------
    kern1 = functools.partial(_upsample_conv1_kernel, K=K, pad_l=pad_l, L_out=L_out, Bt=Bt)
    blk1 = (Bt * (2 * C_in_p * Lw * 4 + 2 * C_out_p * Lw * 2 + 2 * C_out_p * 4)
            + 2 * K * C_out_p * C_in_p + 4 * Lw)
    y1, res, mu1, m21 = pl.pallas_call(
        kern1,
        grid=grid,
        in_specs=[
            pl.BlockSpec((Bt, C_in_p, Lw), lambda i: (i, 0, 0)),
            pl.BlockSpec((Bt, C_in_p, Lw), lambda i: (i, 0, 0)),
            pl.BlockSpec((1, 1, Lw), lambda i: (0, 0, 0)),
            pl.BlockSpec((K, C_out_p, C_in_p), lambda i: (0, 0, 0)),
        ],
        out_specs=[
            pl.BlockSpec((Bt, C_out_p, Lw), lambda i: (i, 0, 0)),
            pl.BlockSpec((Bt, C_out_p, Lw), lambda i: (i, 0, 0)),
            pl.BlockSpec((Bt, C_out_p, 1), lambda i: (i, 0, 0)),
            pl.BlockSpec((Bt, C_out_p, 1), lambda i: (i, 0, 0)),
        ],
        out_shape=(
            jax.ShapeDtypeStruct((B, C_out_p, Lw), bf16),
            jax.ShapeDtypeStruct((B, C_out_p, Lw), bf16),
            jax.ShapeDtypeStruct((B, C_out_p, 1), f32),
            jax.ShapeDtypeStruct((B, C_out_p, 1), f32),
        ),
        compiler_params=pltpu.CompilerParams(
            dimension_semantics=("parallel",),
            vmem_limit_bytes=vmem_limit(blk1),
        ),
    )(xlo_p, xhi_p, wf_p, w1f)

    sc1, sh1 = _combine_bn_stats(mu1, m21, g1p, b1p, L_out, B)

    # ------------------ stage 2: bn1 + relu + conv2 + BN2 partials ------------------
    kern2 = functools.partial(_bn_relu_conv2_kernel, K=K, pad_l=pad_l, L_out=L_out, Bt=Bt)
    blk2 = (Bt * (2 * C_out_p * Lw * 2 + 2 * C_out_p * 4)
            + 2 * K * C_out_p * C_out_p + 4 * C_out_p * 2)
    y2, mu2, m22 = pl.pallas_call(
        kern2,
        grid=grid,
        in_specs=[
            pl.BlockSpec((Bt, C_out_p, Lw), lambda i: (i, 0, 0)),
            pl.BlockSpec((C_out_p, 1), lambda i: (0, 0)),
            pl.BlockSpec((C_out_p, 1), lambda i: (0, 0)),
            pl.BlockSpec((K, C_out_p, C_out_p), lambda i: (0, 0, 0)),
        ],
        out_specs=[
            pl.BlockSpec((Bt, C_out_p, Lw), lambda i: (i, 0, 0)),
            pl.BlockSpec((Bt, C_out_p, 1), lambda i: (i, 0, 0)),
            pl.BlockSpec((Bt, C_out_p, 1), lambda i: (i, 0, 0)),
        ],
        out_shape=(
            jax.ShapeDtypeStruct((B, C_out_p, Lw), bf16),
            jax.ShapeDtypeStruct((B, C_out_p, 1), f32),
            jax.ShapeDtypeStruct((B, C_out_p, 1), f32),
        ),
        compiler_params=pltpu.CompilerParams(
            dimension_semantics=("parallel",),
            vmem_limit_bytes=vmem_limit(blk2),
        ),
    )(y1, sc1, sh1, w2f)

    sc2, sh2 = _combine_bn_stats(mu2, m22, g2p, b2p, L_out, B)

    # ------------------ stage 3: bn2 + relu + residual ------------------
    kern3 = functools.partial(_bn_relu_residual_kernel, Bt=Bt)
    blk3 = Bt * (2 * C_out_p * Lw * 2 + C_out_p * Lw * 4) + 4 * C_out_p * 2
    out_p = pl.pallas_call(
        kern3,
        grid=grid,
        in_specs=[
            pl.BlockSpec((Bt, C_out_p, Lw), lambda i: (i, 0, 0)),
            pl.BlockSpec((C_out_p, 1), lambda i: (0, 0)),
            pl.BlockSpec((C_out_p, 1), lambda i: (0, 0)),
            pl.BlockSpec((Bt, C_out_p, Lw), lambda i: (i, 0, 0)),
        ],
        out_specs=pl.BlockSpec((Bt, C_out_p, Lw), lambda i: (i, 0, 0)),
        out_shape=jax.ShapeDtypeStruct((B, C_out_p, Lw), f32),
        compiler_params=pltpu.CompilerParams(
            dimension_semantics=("parallel",),
            vmem_limit_bytes=vmem_limit(blk3),
        ),
    )(y2, sc2, sh2, res)

    return out_p[:, :C_out, :L_out]


def _reference(x, w1, w2, g1, b1, g2, b2, up):
    """Pure-JAX f32 re-implementation of the PyTorch forward (correctness check)."""
    B, C_in, L_in = x.shape
    C_out, _, K = w1.shape
    L_out = int(L_in * up)
    low, high, frac = _linear_interp_indices(L_in, L_out)
    frac = jnp.asarray(frac, jnp.float32)
    x_up = x[:, :, low] * (1.0 - frac) + x[:, :, high] * frac

    def conv_same(h, w):
        k = w.shape[-1]
        pad_l = (k - 1) // 2
        hp = jnp.pad(h, ((0, 0), (0, 0), (pad_l, k - 1 - pad_l)))
        L = h.shape[-1]
        return sum(jnp.einsum('oc,bct->bot', w[:, :, j], hp[:, :, j:j + L])
                   for j in range(k))

    def bn_relu(h, g, beta):
        mean = jnp.mean(h, axis=(0, 2), keepdims=True)
        var = jnp.mean((h - mean) ** 2, axis=(0, 2), keepdims=True)
        hn = (h - mean) / jnp.sqrt(var + EPS) * g.reshape(1, -1, 1) + beta.reshape(1, -1, 1)
        return jnp.maximum(hn, 0.0)

    h = bn_relu(conv_same(x_up, w1), g1, b1)
    h = bn_relu(conv_same(h, w2), g2, b2)
    return h + x_up[:, :C_out, :]


if __name__ == "__main__":
    B, n_input, n_output, L, up, K = 2, 8, 4, 16, 2, 3

    key = jax.random.PRNGKey(0)
    k1, k2, k3, k4, k5, k6, k7 = jax.random.split(key, 7)
    x = jax.random.normal(k1, (B, n_input, L), jnp.float32)
    w1 = 0.2 * jax.random.normal(k2, (n_output, n_input, K), jnp.float32)
    w2 = 0.2 * jax.random.normal(k3, (n_output, n_output, K), jnp.float32)
    g1 = 1.0 + 0.1 * jax.random.normal(k4, (n_output,), jnp.float32)
    b1 = 0.1 * jax.random.normal(k5, (n_output,), jnp.float32)
    g2 = 1.0 + 0.1 * jax.random.normal(k6, (n_output,), jnp.float32)
    b2 = 0.1 * jax.random.normal(k7, (n_output,), jnp.float32)

    out = jax.block_until_ready(res_upsample_block(x, w1, w2, g1, b1, g2, b2, up))
    ref = jax.block_until_ready(_reference(x, w1, w2, g1, b1, g2, b2, up))
    # conv matmuls run in bf16 on the MXU (f32 accumulation) and inter-stage tensors
    # are stored in bf16 -> loosened tolerance.
    np.testing.assert_allclose(np.asarray(out), np.asarray(ref), rtol=5e-2, atol=5e-2)
    print("KERNEL_OK")
</pallas_src>

<mosaic_0001>
module attributes {stable_mosaic.version = 11 : i64} {
  func.func @_upsample_conv1_kernel(%arg0: i32, %arg1: memref<2x8x128xf32, #tpu.memory_space<vmem>>, %arg2: memref<2x8x128xf32, #tpu.memory_space<vmem>>, %arg3: memref<1x1x128xf32, #tpu.memory_space<vmem>>, %arg4: memref<3x8x8xbf16, #tpu.memory_space<vmem>>, %arg5: memref<2x8x128xbf16, #tpu.memory_space<vmem>>, %arg6: memref<2x8x128xbf16, #tpu.memory_space<vmem>>, %arg7: memref<2x8x1xf32, #tpu.memory_space<vmem>>, %arg8: memref<2x8x1xf32, #tpu.memory_space<vmem>>) attributes {dimension_semantics = [#tpu.dimension_semantics<parallel>], iteration_bounds = array<i64: 1>, scalar_prefetch = 0 : i64, scratch_operands = 0 : i64, tpu.core_type = #tpu.core_type<tc>, window_params = [{transform_indices = @transform_0, window_bounds = array<i64: 2, 8, 128>}, {transform_indices = @transform_1, window_bounds = array<i64: 2, 8, 128>}, {pipeline_mode = #tpu.pipeline_mode<synchronous>, transform_indices = @transform_2, window_bounds = array<i64: 1, 1, 128>}, {pipeline_mode = #tpu.pipeline_mode<synchronous>, transform_indices = @transform_3, window_bounds = array<i64: 3, 8, 8>}, {transform_indices = @transform_4, window_bounds = array<i64: 2, 8, 128>}, {transform_indices = @transform_5, window_bounds = array<i64: 2, 8, 128>}, {transform_indices = @transform_6, window_bounds = array<i64: 2, 8, 1>}, {transform_indices = @transform_7, window_bounds = array<i64: 2, 8, 1>}]} {
    %0 = tpu.iota {dimensions = array<i32: 1>} : vector<1x128xi32>
    %c0 = arith.constant 0 : index
    %c0_0 = arith.constant 0 : index
    %c0_1 = arith.constant 0 : index
    %1 = vector.load %arg3[%c0, %c0_0, %c0_1] : memref<1x1x128xf32, #tpu.memory_space<vmem>>, vector<1x1x128xf32>
    %2 = vector.shape_cast %1 : vector<1x1x128xf32> to vector<1x128xf32>
    %c0_2 = arith.constant 0 : index
    %c0_3 = arith.constant 0 : index
    %c0_4 = arith.constant 0 : index
    %3 = vector.load %arg1[%c0_2, %c0_3, %c0_4] : memref<2x8x128xf32, #tpu.memory_space<vmem>>, vector<1x8x128xf32>
    %4 = vector.shape_cast %3 : vector<1x8x128xf32> to vector<8x128xf32>
    %c0_5 = arith.constant 0 : index
    %c0_6 = arith.constant 0 : index
    %c0_7 = arith.constant 0 : index
    %5 = vector.load %arg2[%c0_5, %c0_6, %c0_7] : memref<2x8x128xf32, #tpu.memory_space<vmem>>, vector<1x8x128xf32>
    %6 = vector.shape_cast %5 : vector<1x8x128xf32> to vector<8x128xf32>
    %7 = arith.subf %6, %4 : vector<8x128xf32>
    %8 = vector.broadcast %2 : vector<1x128xf32> to vector<8x128xf32>
    %9 = arith.mulf %7, %8 : vector<8x128xf32>
    %10 = arith.addf %4, %9 : vector<8x128xf32>
    %11 = arith.truncf %10 : vector<8x128xf32> to vector<8x128xbf16>
    %c0_8 = arith.constant 0 : index
    %c0_9 = arith.constant 0 : index
    %c0_10 = arith.constant 0 : index
    %12 = vector.load %arg6[%c0_8, %c0_9, %c0_10] : memref<2x8x128xbf16, #tpu.memory_space<vmem>>, vector<1x8x128xbf16>
    %13 = vector.shape_cast %12 : vector<1x8x128xbf16> to vector<8x128xbf16>
    %14 = vector.shape_cast %11 : vector<8x128xbf16> to vector<1x8x128xbf16>
    tpu.vector_store %arg6[%c0_8, %c0_9, %c0_10], %14 {strides = array<i32>} : memref<2x8x128xbf16, #tpu.memory_space<vmem>>, vector<1x8x128xbf16>,
    %cst = arith.constant 0.000000e+00 : f32
    %15 = vector.broadcast %cst : f32 to vector<8x128xf32>
    %c1_i32 = arith.constant 1 : i32
    %16 = tpu.dynamic_rotate %10 by %c1_i32 dim 1 : vector<8x128xf32>, i32 -> vector<8x128xf32>
    %c1_i32_11 = arith.constant 1 : i32
    %17 = vector.broadcast %c1_i32_11 : i32 to vector<1x128xi32>
    %18 = arith.cmpi sge, %0, %17 : vector<1x128xi32>
    %c33_i32 = arith.constant 33 : i32
    %19 = vector.broadcast %c33_i32 : i32 to vector<1x128xi32>
    %20 = arith.cmpi slt, %0, %19 : vector<1x128xi32>
    %21 = arith.andi %18, %20 : vector<1x128xi1>
    %cst_12 = arith.constant 0.000000e+00 : f32
    %22 = vector.shape_cast %21 : vector<1x128xi1> to vector<1x128xi1>
    %23 = vector.broadcast %22 : vector<1x128xi1> to vector<8x128xi1>
    %24 = vector.broadcast %cst_12 : f32 to vector<8x128xf32>
    %25 = arith.select %23, %16, %24 : vector<8x128xi1>, vector<8x128xf32>
    %26 = arith.truncf %25 : vector<8x128xf32> to vector<8x128xbf16>
    %c0_13 = arith.constant 0 : index
    %c0_14 = arith.constant 0 : index
    %c0_15 = arith.constant 0 : index
    %27 = vector.load %arg4[%c0_13, %c0_14, %c0_15] : memref<3x8x8xbf16, #tpu.memory_space<vmem>>, vector<1x8x8xbf16>
    %28 = vector.shape_cast %27 : vector<1x8x8xbf16> to vector<8x8xbf16>
    %cst_16 = arith.constant dense<0.000000e+00> : vector<8x128xf32>
    %29 = tpu.matmul %28, %26, %cst_16 {dimension_numbers = #tpu.dot_dimension_numbers<[1], [0], [0], [1], [0, 0, 1, 1], [], []>} : vector<8x8xbf16>, vector<8x128xbf16>, vector<8x128xf32> -> vector<8x128xf32>
    %30 = arith.addf %15, %29 : vector<8x128xf32>
    %c0_i32 = arith.constant 0 : i32
    %31 = vector.broadcast %c0_i32 : i32 to vector<1x128xi32>
    %32 = arith.cmpi sge, %0, %31 : vector<1x128xi32>
    %c32_i32 = arith.constant 32 : i32
    %33 = vector.broadcast %c32_i32 : i32 to vector<1x128xi32>
    %34 = arith.cmpi slt, %0, %33 : vector<1x128xi32>
    %35 = arith.andi %32, %34 : vector<1x128xi1>
    %cst_17 = arith.constant 0.000000e+00 : f32
    %36 = vector.shape_cast %35 : vector<1x128xi1> to vector<1x128xi1>
    %37 = vector.broadcast %36 : vector<1x128xi1> to vector<8x128xi1>
    %38 = vector.broadcast %cst_17 : f32 to vector<8x128xf32>
    %39 = arith.select %37, %10, %38 : vector<8x128xi1>, vector<8x128xf32>
    %40 = arith.truncf %39 : vector<8x128xf32> to vector<8x128xbf16>
    %c1 = arith.constant 1 : index
    %c0_18 = arith.constant 0 : index
    %c0_19 = arith.constant 0 : index
    %41 = vector.load %arg4[%c1, %c0_18, %c0_19] : memref<3x8x8xbf16, #tpu.memory_space<vmem>>, vector<1x8x8xbf16>
    %42 = vector.shape_cast %41 : vector<1x8x8xbf16> to vector<8x8xbf16>
    %cst_20 = arith.constant dense<0.000000e+00> : vector<8x128xf32>
    %43 = tpu.matmul %42, %40, %cst_20 {dimension_numbers = #tpu.dot_dimension_numbers<[1], [0], [0], [1], [0, 0, 1, 1], [], []>} : vector<8x8xbf16>, vector<8x128xbf16>, vector<8x128xf32> -> vector<8x128xf32>
    %44 = arith.addf %30, %43 : vector<8x128xf32>
    %c127_i32 = arith.constant 127 : i32
    %45 = tpu.dynamic_rotate %10 by %c127_i32 dim 1 : vector<8x128xf32>, i32 -> vector<8x128xf32>
    %c-1_i32 = arith.constant -1 : i32
    %46 = vector.broadcast %c-1_i32 : i32 to vector<1x128xi32>
    %47 = arith.cmpi sge, %0, %46 : vector<1x128xi32>
    %c31_i32 = arith.constant 31 : i32
    %48 = vector.broadcast %c31_i32 : i32 to vector<1x128xi32>
    %49 = arith.cmpi slt, %0, %48 : vector<1x128xi32>
    %50 = arith.andi %47, %49 : vector<1x128xi1>
    %cst_21 = arith.constant 0.000000e+00 : f32
    %51 = vector.shape_cast %50 : vector<1x128xi1> to vector<1x128xi1>
    %52 = vector.broadcast %51 : vector<1x128xi1> to vector<8x128xi1>
    %53 = vector.broadcast %cst_21 : f32 to vector<8x128xf32>
    %54 = arith.select %52, %45, %53 : vector<8x128xi1>, vector<8x128xf32>
    %55 = arith.truncf %54 : vector<8x128xf32> to vector<8x128xbf16>
    %c2 = arith.constant 2 : index
    %c0_22 = arith.constant 0 : index
    %c0_23 = arith.constant 0 : index
    %56 = vector.load %arg4[%c2, %c0_22, %c0_23] : memref<3x8x8xbf16, #tpu.memory_space<vmem>>, vector<1x8x8xbf16>
    %57 = vector.shape_cast %56 : vector<1x8x8xbf16> to vector<8x8xbf16>
    %cst_24 = arith.constant dense<0.000000e+00> : vector<8x128xf32>
    %58 = tpu.matmul %57, %55, %cst_24 {dimension_numbers = #tpu.dot_dimension_numbers<[1], [0], [0], [1], [0, 0, 1, 1], [], []>} : vector<8x8xbf16>, vector<8x128xbf16>, vector<8x128xf32> -> vector<8x128xf32>
    %59 = arith.addf %44, %58 : vector<8x128xf32>
    %c32_i32_25 = arith.constant 32 : i32
    %60 = vector.broadcast %c32_i32_25 : i32 to vector<1x128xi32>
    %61 = arith.cmpi slt, %0, %60 : vector<1x128xi32>
    %cst_26 = arith.constant 0.000000e+00 : f32
    %62 = vector.shape_cast %61 : vector<1x128xi1> to vector<1x128xi1>
    %63 = vector.broadcast %62 : vector<1x128xi1> to vector<8x128xi1>
    %64 = vector.broadcast %cst_26 : f32 to vector<8x128xf32>
    %65 = arith.select %63, %59, %64 : vector<8x128xi1>, vector<8x128xf32>
    %66 = arith.truncf %65 : vector<8x128xf32> to vector<8x128xbf16>
    %c0_27 = arith.constant 0 : index
    %c0_28 = arith.constant 0 : index
    %c0_29 = arith.constant 0 : index
    %67 = vector.load %arg5[%c0_27, %c0_28, %c0_29] : memref<2x8x128xbf16, #tpu.memory_space<vmem>>, vector<1x8x128xbf16>
    %68 = vector.shape_cast %67 : vector<1x8x128xbf16> to vector<8x128xbf16>
    %69 = vector.shape_cast %66 : vector<8x128xbf16> to vector<1x8x128xbf16>
    tpu.vector_store %arg5[%c0_27, %c0_28, %c0_29], %69 {strides = array<i32>} : memref<2x8x128xbf16, #tpu.memory_space<vmem>>, vector<1x8x128xbf16>,
    %cst_30 = arith.constant dense<0.000000e+00> : vector<8xf32>
    %70 = vector.multi_reduction <add>, %65, %cst_30 [1] : vector<8x128xf32> to vector<8xf32>
    %71 = vector.shape_cast %70 : vector<8xf32> to vector<8x1xf32>
    %cst_31 = arith.constant 3.125000e-02 : f32
    %72 = vector.broadcast %cst_31 : f32 to vector<8x1xf32>
    %73 = arith.mulf %71, %72 : vector<8x1xf32>
    %c32_i32_32 = arith.constant 32 : i32
    %74 = vector.broadcast %c32_i32_32 : i32 to vector<1x128xi32>
    %75 = arith.cmpi slt, %0, %74 : vector<1x128xi32>
    %76 = vector.broadcast %73 : vector<8x1xf32> to vector<8x128xf32>
    %77 = arith.subf %65, %76 : vector<8x128xf32>
    %cst_33 = arith.constant 0.000000e+00 : f32
    %78 = vector.shape_cast %75 : vector<1x128xi1> to vector<1x128xi1>
    %79 = vector.broadcast %78 : vector<1x128xi1> to vector<8x128xi1>
    %80 = vector.broadcast %cst_33 : f32 to vector<8x128xf32>
    %81 = arith.select %79, %77, %80 : vector<8x128xi1>, vector<8x128xf32>
    %c0_34 = arith.constant 0 : index
    %c0_35 = arith.constant 0 : index
    %c0_36 = arith.constant 0 : index
    %82 = vector.load %arg7[%c0_34, %c0_35, %c0_36] : memref<2x8x1xf32, #tpu.memory_space<vmem>>, vector<1x8x1xf32>
    %83 = vector.shape_cast %82 : vector<1x8x1xf32> to vector<8x1xf32>
    %84 = vector.shape_cast %73 : vector<8x1xf32> to vector<1x8x1xf32>
    tpu.vector_store %arg7[%c0_34, %c0_35, %c0_36], %84 {strides = array<i32>} : memref<2x8x1xf32, #tpu.memory_space<vmem>>, vector<1x8x1xf32>,
    %85 = arith.mulf %81, %81 : vector<8x128xf32>
    %cst_37 = arith.constant dense<0.000000e+00> : vector<8xf32>
    %86 = vector.multi_reduction <add>, %85, %cst_37 [1] : vector<8x128xf32> to vector<8xf32>
    %87 = vector.shape_cast %86 : vector<8xf32> to vector<8x1xf32>
    %c0_38 = arith.constant 0 : index
    %c0_39 = arith.constant 0 : index
    %c0_40 = arith.constant 0 : index
    %88 = vector.load %arg8[%c0_38, %c0_39, %c0_40] : memref<2x8x1xf32, #tpu.memory_space<vmem>>, vector<1x8x1xf32>
    %89 = vector.shape_cast %88 : vector<1x8x1xf32> to vector<8x1xf32>
    %90 = vector.shape_cast %87 : vector<8x1xf32> to vector<1x8x1xf32>
    tpu.vector_store %arg8[%c0_38, %c0_39, %c0_40], %90 {strides = array<i32>} : memref<2x8x1xf32, #tpu.memory_space<vmem>>, vector<1x8x1xf32>,
    %c1_41 = arith.constant 1 : index
    %c0_42 = arith.constant 0 : index
    %c0_43 = arith.constant 0 : index
    %91 = vector.load %arg1[%c1_41, %c0_42, %c0_43] : memref<2x8x128xf32, #tpu.memory_space<vmem>>, vector<1x8x128xf32>
    %92 = vector.shape_cast %91 : vector<1x8x128xf32> to vector<8x128xf32>
    %c1_44 = arith.constant 1 : index
    %c0_45 = arith.constant 0 : index
    %c0_46 = arith.constant 0 : index
    %93 = vector.load %arg2[%c1_44, %c0_45, %c0_46] : memref<2x8x128xf32, #tpu.memory_space<vmem>>, vector<1x8x128xf32>
    %94 = vector.shape_cast %93 : vector<1x8x128xf32> to vector<8x128xf32>
    %95 = arith.subf %94, %92 : vector<8x128xf32>
    %96 = vector.broadcast %2 : vector<1x128xf32> to vector<8x128xf32>
    %97 = arith.mulf %95, %96 : vector<8x128xf32>
    %98 = arith.addf %92, %97 : vector<8x128xf32>
    %99 = arith.truncf %98 : vector<8x128xf32> to vector<8x128xbf16>
    %c1_47 = arith.constant 1 : index
    %c0_48 = arith.constant 0 : index
    %c0_49 = arith.constant 0 : index
    %100 = vector.load %arg6[%c1_47, %c0_48, %c0_49] : memref<2x8x128xbf16, #tpu.memory_space<vmem>>, vector<1x8x128xbf16>
    %101 = vector.shape_cast %100 : vector<1x8x128xbf16> to vector<8x128xbf16>
    %102 = vector.shape_cast %99 : vector<8x128xbf16> to vector<1x8x128xbf16>
    tpu.vector_store %arg6[%c1_47, %c0_48, %c0_49], %102 {strides = array<i32>} : memref<2x8x128xbf16, #tpu.memory_space<vmem>>, vector<1x8x128xbf16>,
    %cst_50 = arith.constant 0.000000e+00 : f32
    %103 = vector.broadcast %cst_50 : f32 to vector<8x128xf32>
    %c1_i32_51 = arith.constant 1 : i32
    %104 = tpu.dynamic_rotate %98 by %c1_i32_51 dim 1 : vector<8x128xf32>, i32 -> vector<8x128xf32>
    %c1_i32_52 = arith.constant 1 : i32
    %105 = vector.broadcast %c1_i32_52 : i32 to vector<1x128xi32>
    %106 = arith.cmpi sge, %0, %105 : vector<1x128xi32>
    %c33_i32_53 = arith.constant 33 : i32
    %107 = vector.broadcast %c33_i32_53 : i32 to vector<1x128xi32>
    %108 = arith.cmpi slt, %0, %107 : vector<1x128xi32>
    %109 = arith.andi %106, %108 : vector<1x128xi1>
    %cst_54 = arith.constant 0.000000e+00 : f32
    %110 = vector.shape_cast %109 : vector<1x128xi1> to vector<1x128xi1>
    %111 = vector.broadcast %110 : vector<1x128xi1> to vector<8x128xi1>
    %112 = vector.broadcast %cst_54 : f32 to vector<8x128xf32>
    %113 = arith.select %111, %104, %112 : vector<8x128xi1>, vector<8x128xf32>
    %114 = arith.truncf %113 : vector<8x128xf32> to vector<8x128xbf16>
    %c0_55 = arith.constant 0 : index
    %c0_56 = arith.constant 0 : index
    %c0_57 = arith.constant 0 : index
    %115 = vector.load %arg4[%c0_55, %c0_56, %c0_57] : memref<3x8x8xbf16, #tpu.memory_space<vmem>>, vector<1x8x8xbf16>
    %116 = vector.shape_cast %115 : vector<1x8x8xbf16> to vector<8x8xbf16>
    %cst_58 = arith.constant dense<0.000000e+00> : vector<8x128xf32>
    %117 = tpu.matmul %116, %114, %cst_58 {dimension_numbers = #tpu.dot_dimension_numbers<[1], [0], [0], [1], [0, 0, 1, 1], [], []>} : vector<8x8xbf16>, vector<8x128xbf16>, vector<8x128xf32> -> vector<8x128xf32>
    %118 = arith.addf %103, %117 : vector<8x128xf32>
    %c0_i32_59 = arith.constant 0 : i32
    %119 = vector.broadcast %c0_i32_59 : i32 to vector<1x128xi32>
    %120 = arith.cmpi sge, %0, %119 : vector<1x128xi32>
    %c32_i32_60 = arith.constant 32 : i32
    %121 = vector.broadcast %c32_i32_60 : i32 to vector<1x128xi32>
    %122 = arith.cmpi slt, %0, %121 : vector<1x128xi32>
    %123 = arith.andi %120, %122 : vector<1x128xi1>
    %cst_61 = arith.constant 0.000000e+00 : f32
    %124 = vector.shape_cast %123 : vector<1x128xi1> to vector<1x128xi1>
    %125 = vector.broadcast %124 : vector<1x128xi1> to vector<8x128xi1>
    %126 = vector.broadcast %cst_61 : f32 to vector<8x128xf32>
    %127 = arith.select %125, %98, %126 : vector<8x128xi1>, vector<8x128xf32>
    %128 = arith.truncf %127 : vector<8x128xf32> to vector<8x128xbf16>
    %c1_62 = arith.constant 1 : index
    %c0_63 = arith.constant 0 : index
    %c0_64 = arith.constant 0 : index
    %129 = vector.load %arg4[%c1_62, %c0_63, %c0_64] : memref<3x8x8xbf16, #tpu.memory_space<vmem>>, vector<1x8x8xbf16>
    %130 = vector.shape_cast %129 : vector<1x8x8xbf16> to vector<8x8xbf16>
    %cst_65 = arith.constant dense<0.000000e+00> : vector<8x128xf32>
    %131 = tpu.matmul %130, %128, %cst_65 {dimension_numbers = #tpu.dot_dimension_numbers<[1], [0], [0], [1], [0, 0, 1, 1], [], []>} : vector<8x8xbf16>, vector<8x128xbf16>, vector<8x128xf32> -> vector<8x128xf32>
    %132 = arith.addf %118, %131 : vector<8x128xf32>
    %c127_i32_66 = arith.constant 127 : i32
    %133 = tpu.dynamic_rotate %98 by %c127_i32_66 dim 1 : vector<8x128xf32>, i32 -> vector<8x128xf32>
    %c-1_i32_67 = arith.constant -1 : i32
    %134 = vector.broadcast %c-1_i32_67 : i32 to vector<1x128xi32>
    %135 = arith.cmpi sge, %0, %134 : vector<1x128xi32>
    %c31_i32_68 = arith.constant 31 : i32
    %136 = vector.broadcast %c31_i32_68 : i32 to vector<1x128xi32>
    %137 = arith.cmpi slt, %0, %136 : vector<1x128xi32>
    %138 = arith.andi %135, %137 : vector<1x128xi1>
    %cst_69 = arith.constant 0.000000e+00 : f32
    %139 = vector.shape_cast %138 : vector<1x128xi1> to vector<1x128xi1>
    %140 = vector.broadcast %139 : vector<1x128xi1> to vector<8x128xi1>
    %141 = vector.broadcast %cst_69 : f32 to vector<8x128xf32>
    %142 = arith.select %140, %133, %141 : vector<8x128xi1>, vector<8x128xf32>
    %143 = arith.truncf %142 : vector<8x128xf32> to vector<8x128xbf16>
    %c2_70 = arith.constant 2 : index
    %c0_71 = arith.constant 0 : index
    %c0_72 = arith.constant 0 : index
    %144 = vector.load %arg4[%c2_70, %c0_71, %c0_72] : memref<3x8x8xbf16, #tpu.memory_space<vmem>>, vector<1x8x8xbf16>
    %145 = vector.shape_cast %144 : vector<1x8x8xbf16> to vector<8x8xbf16>
    %cst_73 = arith.constant dense<0.000000e+00> : vector<8x128xf32>
    %146 = tpu.matmul %145, %143, %cst_73 {dimension_numbers = #tpu.dot_dimension_numbers<[1], [0], [0], [1], [0, 0, 1, 1], [], []>} : vector<8x8xbf16>, vector<8x128xbf16>, vector<8x128xf32> -> vector<8x128xf32>
    %147 = arith.addf %132, %146 : vector<8x128xf32>
    %c32_i32_74 = arith.constant 32 : i32
    %148 = vector.broadcast %c32_i32_74 : i32 to vector<1x128xi32>
    %149 = arith.cmpi slt, %0, %148 : vector<1x128xi32>
    %cst_75 = arith.constant 0.000000e+00 : f32
    %150 = vector.shape_cast %149 : vector<1x128xi1> to vector<1x128xi1>
    %151 = vector.broadcast %150 : vector<1x128xi1> to vector<8x128xi1>
    %152 = vector.broadcast %cst_75 : f32 to vector<8x128xf32>
    %153 = arith.select %151, %147, %152 : vector<8x128xi1>, vector<8x128xf32>
    %154 = arith.truncf %153 : vector<8x128xf32> to vector<8x128xbf16>
    %c1_76 = arith.constant 1 : index
    %c0_77 = arith.constant 0 : index
    %c0_78 = arith.constant 0 : index
    %155 = vector.load %arg5[%c1_76, %c0_77, %c0_78] : memref<2x8x128xbf16, #tpu.memory_space<vmem>>, vector<1x8x128xbf16>
    %156 = vector.shape_cast %155 : vector<1x8x128xbf16> to vector<8x128xbf16>
    %157 = vector.shape_cast %154 : vector<8x128xbf16> to vector<1x8x128xbf16>
    tpu.vector_store %arg5[%c1_76, %c0_77, %c0_78], %157 {strides = array<i32>} : memref<2x8x128xbf16, #tpu.memory_space<vmem>>, vector<1x8x128xbf16>,
    %cst_79 = arith.constant dense<0.000000e+00> : vector<8xf32>
    %158 = vector.multi_reduction <add>, %153, %cst_79 [1] : vector<8x128xf32> to vector<8xf32>
    %159 = vector.shape_cast %158 : vector<8xf32> to vector<8x1xf32>
    %cst_80 = arith.constant 3.125000e-02 : f32
    %160 = vector.broadcast %cst_80 : f32 to vector<8x1xf32>
    %161 = arith.mulf %159, %160 : vector<8x1xf32>
    %c32_i32_81 = arith.constant 32 : i32
    %162 = vector.broadcast %c32_i32_81 : i32 to vector<1x128xi32>
    %163 = arith.cmpi slt, %0, %162 : vector<1x128xi32>
    %164 = vector.broadcast %161 : vector<8x1xf32> to vector<8x128xf32>
    %165 = arith.subf %153, %164 : vector<8x128xf32>
    %cst_82 = arith.constant 0.000000e+00 : f32
    %166 = vector.shape_cast %163 : vector<1x128xi1> to vector<1x128xi1>
    %167 = vector.broadcast %166 : vector<1x128xi1> to vector<8x128xi1>
    %168 = vector.broadcast %cst_82 : f32 to vector<8x128xf32>
    %169 = arith.select %167, %165, %168 : vector<8x128xi1>, vector<8x128xf32>
    %c1_83 = arith.constant 1 : index
    %c0_84 = arith.constant 0 : index
    %c0_85 = arith.constant 0 : index
    %170 = vector.load %arg7[%c1_83, %c0_84, %c0_85] : memref<2x8x1xf32, #tpu.memory_space<vmem>>, vector<1x8x1xf32>
    %171 = vector.shape_cast %170 : vector<1x8x1xf32> to vector<8x1xf32>
    %172 = vector.shape_cast %161 : vector<8x1xf32> to vector<1x8x1xf32>
    tpu.vector_store %arg7[%c1_83, %c0_84, %c0_85], %172 {strides = array<i32>} : memref<2x8x1xf32, #tpu.memory_space<vmem>>, vector<1x8x1xf32>,
    %173 = arith.mulf %169, %169 : vector<8x128xf32>
    %cst_86 = arith.constant dense<0.000000e+00> : vector<8xf32>
    %174 = vector.multi_reduction <add>, %173, %cst_86 [1] : vector<8x128xf32> to vector<8xf32>
    %175 = vector.shape_cast %174 : vector<8xf32> to vector<8x1xf32>
    %c1_87 = arith.constant 1 : index
    %c0_88 = arith.constant 0 : index
    %c0_89 = arith.constant 0 : index
    %176 = vector.load %arg8[%c1_87, %c0_88, %c0_89] : memref<2x8x1xf32, #tpu.memory_space<vmem>>, vector<1x8x1xf32>
    %177 = vector.shape_cast %176 : vector<1x8x1xf32> to vector<8x1xf32>
    %178 = vector.shape_cast %175 : vector<8x1xf32> to vector<1x8x1xf32>
    tpu.vector_store %arg8[%c1_87, %c0_88, %c0_89], %178 {strides = array<i32>} : memref<2x8x1xf32, #tpu.memory_space<vmem>>, vector<1x8x1xf32>,
    return
  }
  func.func @transform_0(%arg0: i32) -> (i32, i32, i32) {
    %c0_i32 = arith.constant 0 : i32
    %c0_i32_0 = arith.constant 0 : i32
    %c0_i32_1 = arith.constant 0 : i32
    return %arg0, %c0_i32, %c0_i32_0 : i32, i32, i32
  }
  func.func @transform_1(%arg0: i32) -> (i32, i32, i32) {
    %c0_i32 = arith.constant 0 : i32
    %c0_i32_0 = arith.constant 0 : i32
    %c0_i32_1 = arith.constant 0 : i32
    return %arg0, %c0_i32, %c0_i32_0 : i32, i32, i32
  }
  func.func @transform_2(%arg0: i32) -> (i32, i32, i32) {
    %c0_i32 = arith.constant 0 : i32
    %c0_i32_0 = arith.constant 0 : i32
    %c0_i32_1 = arith.constant 0 : i32
    %c0_i32_2 = arith.constant 0 : i32
    return %c0_i32, %c0_i32_0, %c0_i32_1 : i32, i32, i32
  }
  func.func @transform_3(%arg0: i32) -> (i32, i32, i32) {
    %c0_i32 = arith.constant 0 : i32
    %c0_i32_0 = arith.constant 0 : i32
    %c0_i32_1 = arith.constant 0 : i32
    %c0_i32_2 = arith.constant 0 : i32
    return %c0_i32, %c0_i32_0, %c0_i32_1 : i32, i32, i32
  }
  func.func @transform_4(%arg0: i32) -> (i32, i32, i32) {
    %c0_i32 = arith.constant 0 : i32
    %c0_i32_0 = arith.constant 0 : i32
    %c0_i32_1 = arith.constant 0 : i32
    return %arg0, %c0_i32, %c0_i32_0 : i32, i32, i32
  }
  func.func @transform_5(%arg0: i32) -> (i32, i32, i32) {
    %c0_i32 = arith.constant 0 : i32
    %c0_i32_0 = arith.constant 0 : i32
    %c0_i32_1 = arith.constant 0 : i32
    return %arg0, %c0_i32, %c0_i32_0 : i32, i32, i32
  }
  func.func @transform_6(%arg0: i32) -> (i32, i32, i32) {
    %c0_i32 = arith.constant 0 : i32
    %c0_i32_0 = arith.constant 0 : i32
    %c0_i32_1 = arith.constant 0 : i32
    return %arg0, %c0_i32, %c0_i32_0 : i32, i32, i32
  }
  func.func @transform_7(%arg0: i32) -> (i32, i32, i32) {
    %c0_i32 = arith.constant 0 : i32
    %c0_i32_0 = arith.constant 0 : i32
    %c0_i32_1 = arith.constant 0 : i32
    return %arg0, %c0_i32, %c0_i32_0 : i32, i32, i32
  }
}

</mosaic_0001>

<llo_original>
// kernel: tpu_custom_call.1
$region0: #{tpu_custom_call.1}
  #allocation0 [shape = 'u32[]', space=smem, size = 0x4, offset = 0x4, fixed_abs, tag = 'smem constant byte address 0x4 - core index']
  #allocation1 [shape = 'u32[144,128]{1,0:T(1,128)}', space=vmem, size = 0x12000, scoped, tag = 'internal scratch']
  %s0 = inlined_call_operand.hbm [shape: f32[2,8,128], index: 0, kind: input, shape index: {}]
  %s1 = inlined_call_operand.hbm [shape: f32[2,8,128], index: 1, kind: input, shape index: {}]
  %s2 = inlined_call_operand.vmem [shape: f32[1,1,128], index: 2, kind: input, shape index: {}]
  %s3 = inlined_call_operand.hbm [shape: bf16[3,8,8], index: 3, kind: input, shape index: {}]
  %s4 = inlined_call_operand.hbm [shape: bf16[2,8,128], index: 4, kind: output, shape index: {0}]
  %s5 = inlined_call_operand.hbm [shape: bf16[2,8,128], index: 5, kind: output, shape index: {1}]
  %s6 = inlined_call_operand.vmem [shape: f32[2,8,1], index: 6, kind: output, shape index: {2}]
  %s7 = inlined_call_operand.vmem [shape: f32[2,8,1], index: 7, kind: output, shape index: {3}]
  %8 = xla_tuple %s4, %s5, %s6, %s7
  %s9 = sld [smem:[#allocation0]]
  $region62: #{tpu_custom_call.1} parent=0
    _
  %s11 = ssub.s32 1, %s9
  %s12 = scalar_select 0, %s11, %s9
  $region1: #{tpu_custom_call.1} parent=0
    #allocation2 [shape = 'u8[8192]{0}', space=vmem, size = 0x2000, scoped, tag = 'input window, operand 0, single buffered']
    #allocation3 [shape = 's32[1]{0}', space=sflag, size = 0x4, scoped, tag = 'scoped memory for tpu_custom_call.1']
    #allocation4 [shape = 's32[1]{0}', space=sflag, size = 0x4, scoped, tag = 'scoped memory for tpu_custom_call.1']
    #allocation5 [shape = 'u8[8192]{0}', space=vmem, size = 0x2000, scoped, tag = 'input window, operand 1, single buffered']
    #allocation6 [shape = 's32[1]{0}', space=sflag, size = 0x4, scoped, tag = 'scoped memory for tpu_custom_call.1']
    #allocation7 [shape = 'u8[6144]{0}', space=vmem, size = 0x1800, scoped, tag = 'input window, operand 3, single buffered']
    #allocation8 [shape = 'u8[4096]{0}', space=vmem, size = 0x1000, scoped, tag = 'output window, operand 0, single buffered']
    #allocation9 [shape = 'u8[4096]{0}', space=vmem, size = 0x1000, scoped, tag = 'output window, operand 1, single buffered']
    #allocation10 [shape = 's32[1]{0}', space=sflag, size = 0x4, scoped, tag = 'scoped memory for tpu_custom_call.1']
    %13 = vsyncpa [#allocation3], 0
    %14 = vsyncpa [#allocation6], 0
    %15 = vsyncpa [#allocation4], 0
    %16 = vsyncpa [#allocation10], 0
    // Predicated region
    $region2: #{tpu_custom_call.1} parent=1 // pred_check
      _
    $region3: #{tpu_custom_call.1} parent=1 // pred_check_branch
      %18 = sbr.rel (0) target = $region5
    $region4: #{tpu_custom_call.1} parent=1 // pred_region
      %s20 = ssub.s32 256, 256
      %21 = vsyncadd [#allocation3], %s20
      %s22 = sshll.u32 [#allocation2], 4
      %s23 = int_to_ptr.vmem [resolvable:$true] %s22
      %28 = dma.hbm_to_vmem [thread:$0]  %s0, 256, %s23, [#allocation3], 128, 128, 8
    $region5: #{tpu_custom_call.1} parent=1 // pred_fallthru
      _
    // Predicated region
    $region6: #{tpu_custom_call.1} parent=1 // pred_check
      _
    $region7: #{tpu_custom_call.1} parent=1 // pred_check_branch
      %30 = sbr.rel (0) target = $region9
    $region8: #{tpu_custom_call.1} parent=1 // pred_region
      %s32 = ssub.s32 256, 256
      %33 = vsyncadd [#allocation6], %s32
      %s34 = sshll.u32 [#allocation5], 4
      %s35 = int_to_ptr.vmem [resolvable:$true] %s34
      %40 = dma.hbm_to_vmem [thread:$0]  %s1, 256, %s35, [#allocation6], 128, 128, 8
    $region9: #{tpu_custom_call.1} parent=1 // pred_fallthru
      _
    // Predicated region
    $region10: #{tpu_custom_call.1} parent=1 // pred_check
      _
    $region11: #{tpu_custom_call.1} parent=1 // pred_check_branch
      %42 = sbr.rel (0) target = $region13
    $region12: #{tpu_custom_call.1} parent=1 // pred_region
      _
    $region13: #{tpu_custom_call.1} parent=1 // pred_fallthru
      _
    // Predicated region
    $region14: #{tpu_custom_call.1} parent=1 // pred_check
      _
    $region15: #{tpu_custom_call.1} parent=1 // pred_check_branch
      %44 = sbr.rel (0) target = $region17
    $region16: #{tpu_custom_call.1} parent=1 // pred_region
      %s46 = ssub.s32 192, 192
      %47 = vsyncadd [#allocation6], %s46
      %s48 = sshll.u32 [#allocation7], 4
      %s49 = int_to_ptr.vmem [resolvable:$true] %s48
      %54 = dma.hbm_to_vmem [thread:$0]  %s3, 192, %s49, [#allocation6], 64, 64, 4
    $region17: #{tpu_custom_call.1} parent=1 // pred_fallthru
      _
    // Predicated region
    $region18: #{tpu_custom_call.1} parent=1 // pred_check
      _
    $region19: #{tpu_custom_call.1} parent=1 // pred_check_branch
      %56 = sbr.rel (0) target = $region21
    $region20: #{tpu_custom_call.1} parent=1 // pred_region
      %57 = dma.done [#allocation3], 256
    $region21: #{tpu_custom_call.1} parent=1 // pred_fallthru
      _
    // Predicated region
    $region22: #{tpu_custom_call.1} parent=1 // pred_check
      _
    $region23: #{tpu_custom_call.1} parent=1 // pred_check_branch
      %59 = sbr.rel (0) target = $region25
    $region24: #{tpu_custom_call.1} parent=1 // pred_region
      %60 = dma.done [#allocation6], 256
    $region25: #{tpu_custom_call.1} parent=1 // pred_fallthru
      _
    // Predicated region
    $region26: #{tpu_custom_call.1} parent=1 // pred_check
      _
    $region27: #{tpu_custom_call.1} parent=1 // pred_check_branch
      %62 = sbr.rel (0) target = $region29
    $region28: #{tpu_custom_call.1} parent=1 // pred_region
      %63 = dma.done [#allocation6], 192
    $region29: #{tpu_custom_call.1} parent=1 // pred_fallthru
      _
    %v65 = vlaneseq
    %v66 = vand.u32 %v65, 127
    %v67 = vld [vmem:[%s2] sm:$0x1]
    %v68 = vld [vmem:[#allocation2] sm:$0xff]
    %v69 = vld [vmem:[#allocation5] sm:$0xff]
    %v70 = vsub.f32 %v69, %v68
    %v72 = vlaneseq
    %v73 = vshrl.u32 %v72, 7
    %v74 = vsub.s32 0, %v73
    %v75 = vrot.slane %v67, %v74
    %v77 = vmul.f32 %v70, %v75
    %v78 = vadd.f32 %v68, %v77
    %v79 = vpack.c.bf16 %v78, %v78
    %80 = vst [vmem:[#allocation9] sm:$0xf] %v79
    %81 = vrot.lane.b32.xlu0 %v78, 1
    %v82 = vpop.permute.xlu0 %81
    %vm83 = vcmp.ge.s32.totalorder %v66, 1
    %vm84 = vcmp.lt.s32.totalorder %v66, 33
    %vm85 = vmand %vm83, %vm84
    %v86 = vsel %vm85, 1, 0
    %vm87 = vcmp.eq.s32.totalorder %v86, 1
    %v88 = vsel %vm87, %v82, 0.0
    %v89 = vpack.c.bf16 %v88, %v88
    %v90 = vld [vmem:[#allocation7] sm:$0xf]
    %vm91 = vcmp.ge.s32.totalorder %v66, 0
    %vm92 = vcmp.lt.s32.totalorder %v66, 32
    %vm93 = vmand %vm91, %vm92
    %v94 = vsel %vm93, 1, 0
    %vm95 = vcmp.eq.s32.totalorder %v94, 1
    %v96 = vsel %vm95, %v78, 0.0
    %v97 = vpack.c.bf16 %v96, %v96
    %s98 = scalar_lea.vmem [#allocation7], 4
    %v99 = vld [vmem:[%s98] sm:$0xf]
    %vm100 = vcmask 64512
    %v102 = vsel %vm100, %v99, 0
    %vm104 = vcmask 1043456
    %v106 = vsel %vm104, %v97, 0
    %108 = vmatprep.subr.bf16.mxu0 0
    %109 = vmatpush1.bf16.msra.mxu0 0
    %110 = vmatprep.subr.bf16.mxu0 0
    %111 = vmatpush1.bf16.msra.mxu0 0
    %112 = vmatprep.subr.bf16.mxu0 0
    %113 = vmatpush1.bf16.msra.mxu0 0
    %114 = vmatprep.subr.bf16.mxu0 0
    %115 = vmatpush1.bf16.msra.mxu0 0
    %116 = vmatprep.subr.bf16.mxu0 0
    %117 = vmatpush1.bf16.msra.mxu0 0
    %118 = vmatprep.subr.bf16.mxu0 0
    %119 = vmatpush1.bf16.msra.mxu0 0
    %120 = vmatprep.subr.bf16.mxu0 0
    %121 = vmatpush1.bf16.msra.mxu0 0
    %122 = vmatprep.subr.bf16.mxu0 0
    %123 = vmatpush1.bf16.msra.mxu0 %v106
    %124 = vmatprep.subr.bf16.mxu0 0
    %125 = vmatpush2.bf16.msra.mxu0 0
    %126 = vmatprep.subr.bf16.mxu0 0
    %127 = vmatpush2.bf16.msra.mxu0 0
    %128 = vmatprep.subr.bf16.mxu0 0
    %129 = vmatpush2.bf16.msra.mxu0 0
    %130 = vmatprep.subr.bf16.mxu0 0
    %131 = vmatpush2.bf16.msra.mxu0 0
    %132 = vmatprep.subr.bf16.mxu0 0
    %133 = vmatpush2.bf16.msra.mxu0 0
    %134 = vmatprep.subr.bf16.mxu0 0
    %135 = vmatpush2.bf16.msra.mxu0 0
    %136 = vmatprep.subr.bf16.mxu0 0
    %137 = vmatpush2.bf16.msra.mxu0 0
    %138 = vmatprep.subr.bf16.mxu0 0
    %139 = vmatpush2.bf16.msra.mxu0 0
    %140 = vmatprep.mubr.bf16.mxu0 0
    %141 = vmatmul.mubr.bf16.gmra.mxu0 %v102
    %v142 = vpop.f32.mrf.mxu0
    %v143 = vadd.f32 0.0, %v142
    %v144 = vpop.f32.mrf.mxu0
    %v145 = vpop.f32.mrf.mxu0
    %v146 = vpop.f32.mrf.mxu0
    %147 = vdwg.mxu0
    %v149 = vsel %vm100, %v90, 0
    %v152 = vsel %vm104, %v89, 0
    %154 = vmatprep.subr.bf16.mxu0 0
    %155 = vmatpush1.bf16.msra.mxu0 0
    %156 = vmatprep.subr.bf16.mxu0 0
    %157 = vmatpush1.bf16.msra.mxu0 0
    %158 = vmatprep.subr.bf16.mxu0 0
    %159 = vmatpush1.bf16.msra.mxu0 0
    %160 = vmatprep.subr.bf16.mxu0 0
    %161 = vmatpush1.bf16.msra.mxu0 0
    %162 = vmatprep.subr.bf16.mxu0 0
    %163 = vmatpush1.bf16.msra.mxu0 0
    %164 = vmatprep.subr.bf16.mxu0 0
    %165 = vmatpush1.bf16.msra.mxu0 0
    %166 = vmatprep.subr.bf16.mxu0 0
    %167 = vmatpush1.bf16.msra.mxu0 0
    %168 = vmatprep.subr.bf16.mxu0 0
    %169 = vmatpush1.bf16.msra.mxu0 %v152
    %170 = vmatprep.subr.bf16.mxu0 0
    %171 = vmatpush2.bf16.msra.mxu0 0
    %172 = vmatprep.subr.bf16.mxu0 0
    %173 = vmatpush2.bf16.msra.mxu0 0
    %174 = vmatprep.subr.bf16.mxu0 0
    %175 = vmatpush2.bf16.msra.mxu0 0
    %176 = vmatprep.subr.bf16.mxu0 0
    %177 = vmatpush2.bf16.msra.mxu0 0
    %178 = vmatprep.subr.bf16.mxu0 0
    %179 = vmatpush2.bf16.msra.mxu0 0
    %180 = vmatprep.subr.bf16.mxu0 0
    %181 = vmatpush2.bf16.msra.mxu0 0
    %182 = vmatprep.subr.bf16.mxu0 0
    %183 = vmatpush2.bf16.msra.mxu0 0
    %184 = vmatprep.subr.bf16.mxu0 0
    %185 = vmatpush2.bf16.msra.mxu0 0
    %186 = vmatprep.mubr.bf16.mxu0 0
    %187 = vmatmul.mubr.bf16.gmra.mxu0 %v149
    %v188 = vpop.f32.mrf.mxu0
    %v189 = vadd.f32 %v143, %v188
    %v190 = vpop.f32.mrf.mxu0
    %v191 = vpop.f32.mrf.mxu0
    %v192 = vpop.f32.mrf.mxu0
    %193 = vdwg.mxu0
    %194 = vrot.lane.b32.xlu0 %v78, 127
    %v195 = vpop.permute.xlu0 %194
    %vm196 = vcmp.ge.s32.totalorder %v66, 4294967295
    %vm197 = vcmp.lt.s32.totalorder %v66, 31
    %vm198 = vmand %vm196, %vm197
    %v199 = vsel %vm198, 1, 0
    %vm200 = vcmp.eq.s32.totalorder %v199, 1
    %v201 = vsel %vm200, %v195, 0.0
    %v202 = vpack.c.bf16 %v201, %v201
    %s203 = scalar_lea.vmem [#allocation7], 8
    %v204 = vld [vmem:[%s203] sm:$0xf]
    %v206 = vsel %vm100, %v204, 0
    %v209 = vsel %vm104, %v202, 0
    %211 = vmatprep.subr.bf16.mxu0 0
    %212 = vmatpush1.bf16.msra.mxu0 0
    %213 = vmatprep.subr.bf16.mxu0 0
    %214 = vmatpush1.bf16.msra.mxu0 0
    %215 = vmatprep.subr.bf16.mxu0 0
    %216 = vmatpush1.bf16.msra.mxu0 0
    %217 = vmatprep.subr.bf16.mxu0 0
    %218 = vmatpush1.bf16.msra.mxu0 0
    %219 = vmatprep.subr.bf16.mxu0 0
    %220 = vmatpush1.bf16.msra.mxu0 0
    %221 = vmatprep.subr.bf16.mxu0 0
    %222 = vmatpush1.bf16.msra.mxu0 0
    %223 = vmatprep.subr.bf16.mxu0 0
    %224 = vmatpush1.bf16.msra.mxu0 0
    %225 = vmatprep.subr.bf16.mxu0 0
    %226 = vmatpush1.bf16.msra.mxu0 %v209
    %227 = vmatprep.subr.bf16.mxu0 0
    %228 = vmatpush2.bf16.msra.mxu0 0
    %229 = vmatprep.subr.bf16.mxu0 0
    %230 = vmatpush2.bf16.msra.mxu0 0
    %231 = vmatprep.subr.bf16.mxu0 0
    %232 = vmatpush2.bf16.msra.mxu0 0
    %233 = vmatprep.subr.bf16.mxu0 0
    %234 = vmatpush2.bf16.msra.mxu0 0
    %235 = vmatprep.subr.bf16.mxu0 0
    %236 = vmatpush2.bf16.msra.mxu0 0
    %237 = vmatprep.subr.bf16.mxu0 0
    %238 = vmatpush2.bf16.msra.mxu0 0
    %239 = vmatprep.subr.bf16.mxu0 0
    %240 = vmatpush2.bf16.msra.mxu0 0
    %241 = vmatprep.subr.bf16.mxu0 0
    %242 = vmatpush2.bf16.msra.mxu0 0
    %243 = vmatprep.mubr.bf16.mxu0 0
    %244 = vmatmul.mubr.bf16.gmra.mxu0 %v206
    %v245 = vpop.f32.mrf.mxu0
    %v246 = vadd.f32 0.0, %v245
    %v247 = vpop.f32.mrf.mxu0
    %v248 = vpop.f32.mrf.mxu0
    %v249 = vpop.f32.mrf.mxu0
    %250 = vdwg.mxu0
    %v251 = vadd.f32 %v189, %v246
    %v252 = vsel %vm92, 1, 0
    %vm253 = vcmp.eq.s32.totalorder %v252, 1
    %v254 = vsel %vm253, %v251, 0.0
    %v255 = vpack.c.bf16 %v254, %v254
    %256 = vst [vmem:[#allocation8] sm:$0xf] %v255
    %257 = vadd.xlane.f32.xlu0 %v254
    %v258 = vpop.xlane.xlu0 %257
    %v259 = vmul.f32 %v258, 0.03125
    %v260 = vsub.f32 %v254, %v259
    %v261 = vsel %vm253, %v260, 0.0
    %vm262 = vcmask 7168
    %263 = vst.msk [vmem:[%s6] sm:$0xff] %vm262, %v259
    %v264 = vmul.f32 %v261, %v261
    %265 = vadd.xlane.f32.xlu0 %v264
    %v266 = vpop.xlane.xlu0 %265
    %267 = vst.msk [vmem:[%s7] sm:$0xff] %vm262, %v266
    %s268 = scalar_lea.vmem [#allocation2], 8
    %v269 = vld [vmem:[%s268] sm:$0xff]
    %s270 = scalar_lea.vmem [#allocation5], 8
    %v271 = vld [vmem:[%s270] sm:$0xff]
    %v272 = vsub.f32 %v271, %v269
    %v273 = vmul.f32 %v272, %v75
    %v274 = vadd.f32 %v269, %v273
    %v275 = vpack.c.bf16 %v274, %v274
    %s276 = scalar_lea.vmem [#allocation9], 4
    %277 = vst [vmem:[%s276] sm:$0xf] %v275
    %278 = vrot.lane.b32.xlu0 %v274, 1
    %v279 = vpop.permute.xlu0 %278
    %v280 = vsel %vm87, %v279, 0.0
    %v281 = vpack.c.bf16 %v280, %v280
    %v282 = vld [vmem:[#allocation7] sm:$0xf]
    %v283 = vsel %vm95, %v274, 0.0
    %v284 = vpack.c.bf16 %v283, %v283
    %v285 = vld [vmem:[%s98] sm:$0xf]
    %v287 = vsel %vm100, %v285, 0
    %v290 = vsel %vm104, %v284, 0
    %292 = vmatprep.subr.bf16.mxu0 0
    %293 = vmatpush1.bf16.msra.mxu0 0
    %294 = vmatprep.subr.bf16.mxu0 0
    %295 = vmatpush1.bf16.msra.mxu0 0
    %296 = vmatprep.subr.bf16.mxu0 0
    %297 = vmatpush1.bf16.msra.mxu0 0
    %298 = vmatprep.subr.bf16.mxu0 0
    %299 = vmatpush1.bf16.msra.mxu0 0
    %300 = vmatprep.subr.bf16.mxu0 0
    %301 = vmatpush1.bf16.msra.mxu0 0
    %302 = vmatprep.subr.bf16.mxu0 0
    %303 = vmatpush1.bf16.msra.mxu0 0
    %304 = vmatprep.subr.bf16.mxu0 0
    %305 = vmatpush1.bf16.msra.mxu0 0
    %306 = vmatprep.subr.bf16.mxu0 0
    %307 = vmatpush1.bf16.msra.mxu0 %v290
    %308 = vmatprep.subr.bf16.mxu0 0
    %309 = vmatpush2.bf16.msra.mxu0 0
    %310 = vmatprep.subr.bf16.mxu0 0
    %311 = vmatpush2.bf16.msra.mxu0 0
    %312 = vmatprep.subr.bf16.mxu0 0
    %313 = vmatpush2.bf16.msra.mxu0 0
    %314 = vmatprep.subr.bf16.mxu0 0
    %315 = vmatpush2.bf16.msra.mxu0 0
    %316 = vmatprep.subr.bf16.mxu0 0
    %317 = vmatpush2.bf16.msra.mxu0 0
    %318 = vmatprep.subr.bf16.mxu0 0
    %319 = vmatpush2.bf16.msra.mxu0 0
    %320 = vmatprep.subr.bf16.mxu0 0
    %321 = vmatpush2.bf16.msra.mxu0 0
    %322 = vmatprep.subr.bf16.mxu0 0
    %323 = vmatpush2.bf16.msra.mxu0 0
    %324 = vmatprep.mubr.bf16.mxu0 0
    %325 = vmatmul.mubr.bf16.gmra.mxu0 %v287
    %v326 = vpop.f32.mrf.mxu0
    %v327 = vadd.f32 0.0, %v326
    %v328 = vpop.f32.mrf.mxu0
    %v329 = vpop.f32.mrf.mxu0
    %v330 = vpop.f32.mrf.mxu0
    %331 = vdwg.mxu0
    %v333 = vsel %vm100, %v282, 0
    %v336 = vsel %vm104, %v281, 0
    %338 = vmatprep.subr.bf16.mxu0 0
    %339 = vmatpush1.bf16.msra.mxu0 0
    %340 = vmatprep.subr.bf16.mxu0 0
    %341 = vmatpush1.bf16.msra.mxu0 0
    %342 = vmatprep.subr.bf16.mxu0 0
    %343 = vmatpush1.bf16.msra.mxu0 0
    %344 = vmatprep.subr.bf16.mxu0 0
    %345 = vmatpush1.bf16.msra.mxu0 0
    %346 = vmatprep.subr.bf16.mxu0 0
    %347 = vmatpush1.bf16.msra.mxu0 0
    %348 = vmatprep.subr.bf16.mxu0 0
    %349 = vmatpush1.bf16.msra.mxu0 0
    %350 = vmatprep.subr.bf16.mxu0 0
    %351 = vmatpush1.bf16.msra.mxu0 0
    %352 = vmatprep.subr.bf16.mxu0 0
    %353 = vmatpush1.bf16.msra.mxu0 %v336
    %354 = vmatprep.subr.bf16.mxu0 0
    %355 = vmatpush2.bf16.msra.mxu0 0
    %356 = vmatprep.subr.bf16.mxu0 0
    %357 = vmatpush2.bf16.msra.mxu0 0
    %358 = vmatprep.subr.bf16.mxu0 0
    %359 = vmatpush2.bf16.msra.mxu0 0
    %360 = vmatprep.subr.bf16.mxu0 0
    %361 = vmatpush2.bf16.msra.mxu0 0
    %362 = vmatprep.subr.bf16.mxu0 0
    %363 = vmatpush2.bf16.msra.mxu0 0
    %364 = vmatprep.subr.bf16.mxu0 0
    %365 = vmatpush2.bf16.msra.mxu0 0
    %366 = vmatprep.subr.bf16.mxu0 0
    %367 = vmatpush2.bf16.msra.mxu0 0
    %368 = vmatprep.subr.bf16.mxu0 0
    %369 = vmatpush2.bf16.msra.mxu0 0
    %370 = vmatprep.mubr.bf16.mxu0 0
    %371 = vmatmul.mubr.bf16.gmra.mxu0 %v333
    %v372 = vpop.f32.mrf.mxu0
    %v373 = vadd.f32 %v327, %v372
    %v374 = vpop.f32.mrf.mxu0
    %v375 = vpop.f32.mrf.mxu0
    %v376 = vpop.f32.mrf.mxu0
    %377 = vdwg.mxu0
    %378 = vrot.lane.b32.xlu0 %v274, 127
    %v379 = vpop.permute.xlu0 %378
    %v380 = vsel %vm200, %v379, 0.0
    %v381 = vpack.c.bf16 %v380, %v380
    %v382 = vld [vmem:[%s203] sm:$0xf]
    %v384 = vsel %vm100, %v382, 0
    %v387 = vsel %vm104, %v381, 0
    %389 = vmatprep.subr.bf16.mxu0 0
    %390 = vmatpush1.bf16.msra.mxu0 0
    %391 = vmatprep.subr.bf16.mxu0 0
    %392 = vmatpush1.bf16.msra.mxu0 0
    %393 = vmatprep.subr.bf16.mxu0 0
    %394 = vmatpush1.bf16.msra.mxu0 0
    %395 = vmatprep.subr.bf16.mxu0 0
    %396 = vmatpush1.bf16.msra.mxu0 0
    %397 = vmatprep.subr.bf16.mxu0 0
    %398 = vmatpush1.bf16.msra.mxu0 0
    %399 = vmatprep.subr.bf16.mxu0 0
    %400 = vmatpush1.bf16.msra.mxu0 0
    %401 = vmatprep.subr.bf16.mxu0 0
    %402 = vmatpush1.bf16.msra.mxu0 0
    %403 = vmatprep.subr.bf16.mxu0 0
    %404 = vmatpush1.bf16.msra.mxu0 %v387
    %405 = vmatprep.subr.bf16.mxu0 0
    %406 = vmatpush2.bf16.msra.mxu0 0
    %407 = vmatprep.subr.bf16.mxu0 0
    %408 = vmatpush2.bf16.msra.mxu0 0
    %409 = vmatprep.subr.bf16.mxu0 0
    %410 = vmatpush2.bf16.msra.mxu0 0
    %411 = vmatprep.subr.bf16.mxu0 0
    %412 = vmatpush2.bf16.msra.mxu0 0
    %413 = vmatprep.subr.bf16.mxu0 0
    %414 = vmatpush2.bf16.msra.mxu0 0
    %415 = vmatprep.subr.bf16.mxu0 0
    %416 = vmatpush2.bf16.msra.mxu0 0
    %417 = vmatprep.subr.bf16.mxu0 0
    %418 = vmatpush2.bf16.msra.mxu0 0
    %419 = vmatprep.subr.bf16.mxu0 0
    %420 = vmatpush2.bf16.msra.mxu0 0
    %421 = vmatprep.mubr.bf16.mxu0 0
    %422 = vmatmul.mubr.bf16.gmra.mxu0 %v384
    %v423 = vpop.f32.mrf.mxu0
    %v424 = vadd.f32 0.0, %v423
    %v425 = vpop.f32.mrf.mxu0
    %v426 = vpop.f32.mrf.mxu0
    %v427 = vpop.f32.mrf.mxu0
    %428 = vdwg.mxu0
    %v429 = vadd.f32 %v373, %v424
    %v430 = vsel %vm253, %v429, 0.0
    %v431 = vpack.c.bf16 %v430, %v430
    %s432 = scalar_lea.vmem [#allocation8], 4
    %433 = vst [vmem:[%s432] sm:$0xf] %v431
    %434 = vadd.xlane.f32.xlu0 %v430
    %v435 = vpop.xlane.xlu0 %434
    %v436 = vmul.f32 %v435, 0.03125
    %v437 = vsub.f32 %v430, %v436
    %v438 = vsel %vm253, %v437, 0.0
    %s439 = scalar_lea.vmem %s6, 8
    %440 = vst.msk [vmem:[%s439] sm:$0xff] %vm262, %v436
    %v441 = vmul.f32 %v438, %v438
    %442 = vadd.xlane.f32.xlu0 %v441
    %v443 = vpop.xlane.xlu0 %442
    %s444 = scalar_lea.vmem %s7, 8
    %445 = vst.msk [vmem:[%s444] sm:$0xff] %vm262, %v443
    // Predicated region
    $region30: #{tpu_custom_call.1} parent=1 // pred_check
      _
    $region31: #{tpu_custom_call.1} parent=1 // pred_check_branch
      %447 = sbr.rel (0) target = $region33
    $region32: #{tpu_custom_call.1} parent=1 // pred_region
      %s449 = ssub.s32 128, 128
      %450 = vsyncadd [#allocation4], %s449
      %s451 = sshll.u32 [#allocation8], 4
      %s452 = int_to_ptr.vmem [resolvable:$true] %s451
      %457 = dma.vmem_to_hbm [thread:$0]  %s452, 128, %s4, [#allocation4], 64, 64, 4
    $region33: #{tpu_custom_call.1} parent=1 // pred_fallthru
      _
    // Predicated region
    $region34: #{tpu_custom_call.1} parent=1 // pred_check
      _
    $region35: #{tpu_custom_call.1} parent=1 // pred_check_branch
      %459 = sbr.rel (0) target = $region37
    $region36: #{tpu_custom_call.1} parent=1 // pred_region
      %s461 = ssub.s32 128, 128
      %462 = vsyncadd [#allocation10], %s461
      %s463 = sshll.u32 [#allocation9], 4
      %s464 = int_to_ptr.vmem [resolvable:$true] %s463
      %469 = dma.vmem_to_hbm [thread:$0]  %s464, 128, %s5, [#allocation10], 64, 64, 4
    $region37: #{tpu_custom_call.1} parent=1 // pred_fallthru
      _
    // Predicated region
    $region38: #{tpu_custom_call.1} parent=1 // pred_check
      _
    $region39: #{tpu_custom_call.1} parent=1 // pred_check_branch
      %471 = sbr.rel (0) target = $region41
    $region40: #{tpu_custom_call.1} parent=1 // pred_region
      _
    $region41: #{tpu_custom_call.1} parent=1 // pred_fallthru
      _
    // Predicated region
    $region42: #{tpu_custom_call.1} parent=1 // pred_check
      _
    $region43: #{tpu_custom_call.1} parent=1 // pred_check_branch
      %473 = sbr.rel (0) target = $region45
    $region44: #{tpu_custom_call.1} parent=1 // pred_region
      _
    $region45: #{tpu_custom_call.1} parent=1 // pred_fallthru
      _
    // Predicated region
    $region46: #{tpu_custom_call.1} parent=1 // pred_check
      _
    $region47: #{tpu_custom_call.1} parent=1 // pred_check_branch
      %475 = sbr.rel (0) target = $region49
    $region48: #{tpu_custom_call.1} parent=1 // pred_region
      %476 = dma.done [#allocation4], 128
    $region49: #{tpu_custom_call.1} parent=1 // pred_fallthru
      _
    // Predicated region
    $region50: #{tpu_custom_call.1} parent=1 // pred_check
      _
    $region51: #{tpu_custom_call.1} parent=1 // pred_check_branch
      %478 = sbr.rel (0) target = $region53
    $region52: #{tpu_custom_call.1} parent=1 // pred_region
      %479 = dma.done [#allocation10], 128
    $region53: #{tpu_custom_call.1} parent=1 // pred_fallthru
      _
    // Predicated region
    $region54: #{tpu_custom_call.1} parent=1 // pred_check
      _
    $region55: #{tpu_custom_call.1} parent=1 // pred_check_branch
      %481 = sbr.rel (0) target = $region57
    $region56: #{tpu_custom_call.1} parent=1 // pred_region
      _
    $region57: #{tpu_custom_call.1} parent=1 // pred_fallthru
      _
    // Predicated region
    $region58: #{tpu_custom_call.1} parent=1 // pred_check
      _
    $region59: #{tpu_custom_call.1} parent=1 // pred_check_branch
      %483 = sbr.rel (0) target = $region61
    $region60: #{tpu_custom_call.1} parent=1 // pred_region
      _
    $region61: #{tpu_custom_call.1} parent=1 // pred_fallthru
      _
    %484 = vsyncpa [#allocation3], 1
    %485 = vsyncpa [#allocation6], 1
    %486 = vsyncpa [#allocation4], 1
    %487 = vsyncpa [#allocation10], 1

</llo_original>
